<compile_context>
chip_gen: v5e
topology: v5e:2x2
jax: 0.10.0
libtpu: 0.0.40
codegen_flags: <defaults>
</compile_context>

<pallas_src>
import functools

import jax
import jax.numpy as jnp
from jax.experimental import pallas as pl
from jax.experimental.pallas import tpu as pltpu

IN_FEATURES = 26
MAX_TILE_B = 8192  # 8192 rows -> 4 MiB/buffer of x in VMEM after lane padding


def _round_up(n: int, m: int) -> int:
    return ((n + m - 1) // m) * m


def scaled_logreg_kernel(x_ref, w_ref, b_ref, o_ref):
    # x_ref: (TILE_B, F) VMEM   w_ref: (1, F) VMEM
    # b_ref: (1, 1) SMEM        o_ref: (1, TILE_B) VMEM (lane-dense)
    x = x_ref[...]
    w = w_ref[...]
    b = b_ref[0, 0]

    # Linear(26 -> 1) on the MXU with batch mapped to the output lane dim:
    #   (1, F) . (TILE_B, F)^T -> (1, TILE_B)
    z = jax.lax.dot_general(
        w, x,
        dimension_numbers=(((1,), (1,)), ((), ())),
        preferred_element_type=jnp.float32,
    ) + b

    # sigmoid(z) * 9 + 1  ==  4.5 * tanh(z / 2) + 5.5   (single EUP op, no divide)
    o_ref[...] = 4.5 * jnp.tanh(0.5 * z) + 5.5


@functools.partial(jax.jit, static_argnames=("tile_b",))
def scaled_logistic_regression(x, weight, bias, *, tile_b=None):
    """x: (B, 26); weight: (1, 26); bias: (1,). Returns (B, 1) float32."""
    B = x.shape[0]
    x = x.astype(jnp.float32)
    w = weight.astype(jnp.float32).reshape(1, IN_FEATURES)
    b = bias.astype(jnp.float32).reshape(1, 1)

    # Pad the batch to a multiple of 128 so every output store is an unmasked
    # full vreg; features stay at 26 in HBM (lane padding to 128 only happens
    # inside VMEM, where it is bandwidth-free).
    b_padded = _round_up(B, 128)
    if b_padded != B:
        x = jnp.pad(x, ((0, b_padded - B), (0, 0)))

    if tile_b is None:
        tile_b = min(MAX_TILE_B, b_padded)
    # Keep output tiles full-vreg aligned (lane dim multiple of 128,
    # sublane dim of x multiple of 8).
    tile_b = max(128, _round_up(min(tile_b, b_padded), 128))

    grid = (pl.cdiv(b_padded, tile_b),)

    out_row = pl.pallas_call(
        scaled_logreg_kernel,
        out_shape=jax.ShapeDtypeStruct((1, b_padded), jnp.float32),
        grid=grid,
        in_specs=[
            # x: tiled over the batch (sublane) axis.
            pl.BlockSpec((tile_b, IN_FEATURES), lambda i: (i, 0)),
            # weight: grid-invariant block, stays resident in VMEM.
            pl.BlockSpec((1, IN_FEATURES), lambda i: (0, 0)),
            # bias: scalar in SMEM.
            pl.BlockSpec(memory_space=pltpu.MemorySpace.SMEM),
        ],
        # Lane-dense output row, tiled over the batch (lane) axis.
        out_specs=pl.BlockSpec((1, tile_b), lambda i: (0, i)),
        compiler_params=pltpu.CompilerParams(
            dimension_semantics=("parallel",),
        ),
    )(x, w, b)

    # (1, B_padded) -> (B, 1): metadata reshape + slice, no extra kernel work.
    return out_row.reshape(b_padded, 1)[:B]


def _reference(x, weight, bias):
    z = x.astype(jnp.float32) @ weight.astype(jnp.float32).T + bias.astype(jnp.float32)
    return jax.nn.sigmoid(z) * 9.0 + 1.0


if __name__ == "__main__":
    key = jax.random.PRNGKey(0)
    k_x, k_w, k_b = jax.random.split(key, 3)

    B = 8
    # Deterministic "parameter init" mimicking nn.Linear's U(-1/sqrt(fan_in), 1/sqrt(fan_in)).
    bound = 1.0 / jnp.sqrt(jnp.float32(IN_FEATURES))
    weight = jax.random.uniform(k_w, (1, IN_FEATURES), jnp.float32, -bound, bound)
    bias = jax.random.uniform(k_b, (1,), jnp.float32, -bound, bound)
    x = jax.random.normal(k_x, (B, IN_FEATURES), jnp.float32)

    out = scaled_logistic_regression(x, weight, bias)
    out = jax.block_until_ready(out)

    ref = _reference(x, weight, bias)
    assert out.shape == (B, 1), out.shape
    assert jnp.allclose(out, ref, atol=1e-5, rtol=1e-5), "mismatch vs reference"

    print("KERNEL_OK")
</pallas_src>

<mosaic_0001>
module attributes {stable_mosaic.version = 11 : i64} {
  func.func @scaled_logreg_kernel(%arg0: i32, %arg1: memref<128x26xf32, #tpu.memory_space<vmem>>, %arg2: memref<1x26xf32, #tpu.memory_space<vmem>>, %arg3: memref<1x1xf32, #tpu.memory_space<smem>>, %arg4: memref<1x128xf32, #tpu.memory_space<vmem>>) attributes {dimension_semantics = [#tpu.dimension_semantics<parallel>], iteration_bounds = array<i64: 1>, scalar_prefetch = 0 : i64, scratch_operands = 0 : i64, tpu.core_type = #tpu.core_type<tc>, window_params = [{transform_indices = @transform_0, window_bounds = array<i64: 128, 26>}, {pipeline_mode = #tpu.pipeline_mode<synchronous>, transform_indices = @transform_1, window_bounds = array<i64: 1, 26>}, {transform_indices = @transform_2, window_bounds = array<i64: 1, 1>}, {transform_indices = @transform_3, window_bounds = array<i64: 1, 128>}]} {
    %c0 = arith.constant 0 : index
    %c0_0 = arith.constant 0 : index
    %0 = vector.load %arg1[%c0, %c0_0] : memref<128x26xf32, #tpu.memory_space<vmem>>, vector<128x26xf32>
    %c0_1 = arith.constant 0 : index
    %c0_2 = arith.constant 0 : index
    %1 = vector.load %arg2[%c0_1, %c0_2] : memref<1x26xf32, #tpu.memory_space<vmem>>, vector<1x26xf32>
    %c0_3 = arith.constant 0 : index
    %c0_4 = arith.constant 0 : index
    %2 = memref.load %arg3[%c0_3, %c0_4] : memref<1x1xf32, #tpu.memory_space<smem>>
    %cst = arith.constant dense<0.000000e+00> : vector<1x128xf32>
    %3 = tpu.matmul %1, %0, %cst {dimension_numbers = #tpu.dot_dimension_numbers<[1], [1], [0], [0], [0, 0, 1, 0], [], []>} : vector<1x26xf32>, vector<128x26xf32>, vector<1x128xf32> -> vector<1x128xf32>
    %4 = vector.broadcast %2 : f32 to vector<1x128xf32>
    %5 = arith.addf %3, %4 : vector<1x128xf32>
    %cst_5 = arith.constant 5.000000e-01 : f32
    %6 = vector.broadcast %cst_5 : f32 to vector<1x128xf32>
    %7 = arith.mulf %6, %5 : vector<1x128xf32>
    %8 = math.tanh %7 : vector<1x128xf32>
    %cst_6 = arith.constant 4.500000e+00 : f32
    %9 = vector.broadcast %cst_6 : f32 to vector<1x128xf32>
    %10 = arith.mulf %9, %8 : vector<1x128xf32>
    %cst_7 = arith.constant 5.500000e+00 : f32
    %11 = vector.broadcast %cst_7 : f32 to vector<1x128xf32>
    %12 = arith.addf %10, %11 : vector<1x128xf32>
    %c0_8 = arith.constant 0 : index
    %c0_9 = arith.constant 0 : index
    %13 = vector.load %arg4[%c0_8, %c0_9] : memref<1x128xf32, #tpu.memory_space<vmem>>, vector<1x128xf32>
    tpu.vector_store %arg4[%c0_8, %c0_9], %12 {strides = array<i32>} : memref<1x128xf32, #tpu.memory_space<vmem>>, vector<1x128xf32>,
    return
  }
  func.func @transform_0(%arg0: i32) -> (i32, i32) {
    %c0_i32 = arith.constant 0 : i32
    %c0_i32_0 = arith.constant 0 : i32
    return %arg0, %c0_i32 : i32, i32
  }
  func.func @transform_1(%arg0: i32) -> (i32, i32) {
    %c0_i32 = arith.constant 0 : i32
    %c0_i32_0 = arith.constant 0 : i32
    %c0_i32_1 = arith.constant 0 : i32
    return %c0_i32, %c0_i32_0 : i32, i32
  }
  func.func @transform_2(%arg0: i32) -> (i32, i32) {
    %c0_i32 = arith.constant 0 : i32
    %c0_i32_0 = arith.constant 0 : i32
    %c0_i32_1 = arith.constant 0 : i32
    return %c0_i32, %c0_i32_0 : i32, i32
  }
  func.func @transform_3(%arg0: i32) -> (i32, i32) {
    %c0_i32 = arith.constant 0 : i32
    %c0_i32_0 = arith.constant 0 : i32
    return %c0_i32, %arg0 : i32, i32
  }
}

</mosaic_0001>

<llo_original>
// kernel: scaled_logistic_regression.1
$region0: #{scaled_logistic_regression.1}
  #allocation0 [shape = 'u32[]', space=smem, size = 0x4, offset = 0x4, fixed_abs, tag = 'smem constant byte address 0x4 - core index']
  #allocation1 [shape = 'u32[72,128]{1,0:T(1,128)}', space=vmem, size = 0x9000, scoped, tag = 'internal scratch']
  #allocation2 [shape = 'f32[1,1]{1,0:T(1,128)S(6)}', space=smem, size = 0x200, scoped, tag = 'scoped memory for scaled_logistic_regression.1']
  %s0 = inlined_call_operand.vmem [shape: f32[128,26], index: 0, kind: input, shape index: {}]
  %s1 = inlined_call_operand.vmem [shape: f32[1,26], index: 1, kind: input, shape index: {}]
  %s2 = inlined_call_operand.<no memory space> [shape: f32[1,1], index: 2, kind: input, shape index: {}]
  %s3 = inlined_call_operand.vmem [shape: f32[1,128], index: 3, kind: output, shape index: {}]
  %s4 = sld [smem:[#allocation0]]
  $region22: #{scaled_logistic_regression.1} parent=0
    _
  %s6 = ssub.s32 1, %s4
  %s7 = scalar_select 0, %s6, %s4
  %8 = sst [smem:[#allocation2]] %s2
  // Predicated region
  $region2: #{scaled_logistic_regression.1} parent=0 // pred_check
    _
  $region3: #{scaled_logistic_regression.1} parent=0 // pred_check_branch
    %10 = sbr.rel (0) target = $region5
  $region4: #{scaled_logistic_regression.1} parent=0 // pred_region
    _
  $region5: #{scaled_logistic_regression.1} parent=0 // pred_fallthru
    _
  // Predicated region
  $region6: #{scaled_logistic_regression.1} parent=0 // pred_check
    _
  $region7: #{scaled_logistic_regression.1} parent=0 // pred_check_branch
    %12 = sbr.rel (0) target = $region9
  $region8: #{scaled_logistic_regression.1} parent=0 // pred_region
    _
  $region9: #{scaled_logistic_regression.1} parent=0 // pred_fallthru
    _
  // Predicated region
  $region10: #{scaled_logistic_regression.1} parent=0 // pred_check
    _
  $region11: #{scaled_logistic_regression.1} parent=0 // pred_check_branch
    %14 = sbr.rel (0) target = $region13
  $region12: #{scaled_logistic_regression.1} parent=0 // pred_region
    _
  $region13: #{scaled_logistic_regression.1} parent=0 // pred_fallthru
    _
  %v15 = vld [vmem:[%s0] sm:$0xff]
  %v16 = vld [vmem:[%s0 + $0x8] sm:$0xff]
  %v17 = vld [vmem:[%s0 + $0x10] sm:$0xff]
  %v18 = vld [vmem:[%s0 + $0x18] sm:$0xff]
  %v19 = vld [vmem:[%s0 + $0x20] sm:$0xff]
  %v20 = vld [vmem:[%s0 + $0x28] sm:$0xff]
  %v21 = vld [vmem:[%s0 + $0x30] sm:$0xff]
  %v22 = vld [vmem:[%s0 + $0x38] sm:$0xff]
  %v23 = vld [vmem:[%s0 + $0x40] sm:$0xff]
  %v24 = vld [vmem:[%s0 + $0x48] sm:$0xff]
  %v25 = vld [vmem:[%s0 + $0x50] sm:$0xff]
  %v26 = vld [vmem:[%s0 + $0x58] sm:$0xff]
  %v27 = vld [vmem:[%s0 + $0x60] sm:$0xff]
  %v28 = vld [vmem:[%s0 + $0x68] sm:$0xff]
  %v29 = vld [vmem:[%s0 + $0x70] sm:$0xff]
  %v30 = vld [vmem:[%s0 + $0x78] sm:$0xff]
  %v31 = vld [vmem:[%s1] sm:$0x1]
  %s32 = sld [smem:[#allocation2]]
  %v33 = vstv %s32
  %vm34 = vcmask 211968
  %v36 = vsel %vm34, %v31, 0
  %v39 = vsel %vm34, %v15, 0
  %v42 = vsel %vm34, %v16, 0
  %v45 = vsel %vm34, %v17, 0
  %v48 = vsel %vm34, %v18, 0
  %v51 = vsel %vm34, %v19, 0
  %v54 = vsel %vm34, %v20, 0
  %v57 = vsel %vm34, %v21, 0
  %v60 = vsel %vm34, %v22, 0
  %v63 = vsel %vm34, %v23, 0
  %v66 = vsel %vm34, %v24, 0
  %v69 = vsel %vm34, %v25, 0
  %v72 = vsel %vm34, %v26, 0
  %v75 = vsel %vm34, %v27, 0
  %v78 = vsel %vm34, %v28, 0
  %v81 = vsel %vm34, %v29, 0
  %v84 = vsel %vm34, %v30, 0
  %86 = vmatpush.xpose.msra.mxu0 %v84
  %87 = vmatpush.xpose.msra.mxu0 %v81
  %88 = vmatpush.xpose.msra.mxu0 %v78
  %89 = vmatpush.xpose.msra.mxu0 %v75
  %90 = vmatpush.xpose.msra.mxu0 %v72
  %91 = vmatpush.xpose.msra.mxu0 %v69
  %92 = vmatpush.xpose.msra.mxu0 %v66
  %93 = vmatpush.xpose.msra.mxu0 %v63
  %94 = vmatpush.xpose.msra.mxu0 %v60
  %95 = vmatpush.xpose.msra.mxu0 %v57
  %96 = vmatpush.xpose.msra.mxu0 %v54
  %97 = vmatpush.xpose.msra.mxu0 %v51
  %98 = vmatpush.xpose.msra.mxu0 %v48
  %99 = vmatpush.xpose.msra.mxu0 %v45
  %100 = vmatpush.xpose.msra.mxu0 %v42
  %101 = vmatpush.xpose.msra.mxu0 %v39
  %102 = vmatmul.f32.gmra.mxu0 %v36
  %v103 = vpop.f32.mrf.mxu0
  %v104 = vadd.f32 %v33, %v103
  %105 = vdwg.mxu0
  %v106 = vmul.f32 %v104, 0.5
  %v107 = vtanh.pop %v106
  %v108 = vmul.f32 %v107, 4.5
  %v109 = vadd.f32 %v108, 5.5
  %110 = vst [vmem:[%s3] sm:$0x1] %v109
  // Predicated region
  $region14: #{scaled_logistic_regression.1} parent=0 // pred_check
    _
  $region15: #{scaled_logistic_regression.1} parent=0 // pred_check_branch
    %112 = sbr.rel (0) target = $region17
  $region16: #{scaled_logistic_regression.1} parent=0 // pred_region
    _
  $region17: #{scaled_logistic_regression.1} parent=0 // pred_fallthru
    _
  // Predicated region
  $region18: #{scaled_logistic_regression.1} parent=0 // pred_check
    _
  $region19: #{scaled_logistic_regression.1} parent=0 // pred_check_branch
    %114 = sbr.rel (0) target = $region21
  $region20: #{scaled_logistic_regression.1} parent=0 // pred_region
    _
  $region21: #{scaled_logistic_regression.1} parent=0 // pred_fallthru
    _

</llo_original>
